<compile_context>
chip_gen: v7x
topology: tpu7x:2x2x1
jax: 0.10.0
libtpu: 0.0.40
codegen_flags: <defaults>
</compile_context>

<pallas_src>
import jax
import jax.numpy as jnp
from jax import lax
from jax.experimental import pallas as pl
from jax.experimental.pallas import tpu as pltpu

LN_EPS = 1e-6  # LayerNorm3d eps (same as SAM LayerNorm2d)


def _neck_kernel(x_ref, w_ref, g_ref, b_ref, o_ref):
    # x_ref: (tm, D)  token tile (compute dtype, e.g. bf16)
    # w_ref: (C, D)   Conv3d 1x1x1 weight (compute dtype)
    # g_ref: (C, 1)   LayerNorm3d weight (f32)
    # b_ref: (C, 1)   LayerNorm3d bias   (f32)
    # o_ref: (C, tm)  channel-major output tile (f32)
    #
    # Compute the conv as W @ X^T so the result is already channel-major:
    # the "NCDHW transpose" becomes the MXU output orientation (free).
    z = lax.dot_general(
        w_ref[...], x_ref[...],
        dimension_numbers=(((1,), (1,)), ((), ())),
        preferred_element_type=jnp.float32)                    # (C, tm), f32

    # Fused single-pass LayerNorm over the channel axis (axis 0 here).
    inv_c = 1.0 / z.shape[0]
    mean = jnp.sum(z, axis=0, keepdims=True) * inv_c           # (1, tm)
    ex2 = jnp.sum(z * z, axis=0, keepdims=True) * inv_c        # (1, tm)
    var = jnp.maximum(ex2 - mean * mean, 0.0)
    inv = lax.rsqrt(var + LN_EPS)                              # (1, tm), EUP
    scale = inv * g_ref[...]                                   # (C, tm)
    o_ref[...] = z * scale + (b_ref[...] - mean * scale)


def dinov2_neck(tokens, conv_w, ln_gamma, ln_beta, spatial, *,
                tm=512, compute_dtype=jnp.bfloat16):
    """tokens: (B, N, D) patch tokens; conv_w: (C, D). Returns (B, C, S, S, S).

    tm is the token-tile size (rows fed to the MXU per grid step). 512 is a
    good default for v5e/v6e/v7x: ~4 MiB of VMEM with bf16 inputs (fits every
    generation's default scoped VMEM) while reaching HBM roofline. It is
    rounded to a multiple of 128 (lane-dense channel-major stores) and capped
    by the padded token count so tiny inputs don't over-pad.
    """
    B, N, D = tokens.shape
    C = conv_w.shape[0]
    assert N == spatial ** 3

    tm = max(128, (tm // 128) * 128)
    n_pad = pl.cdiv(N, 128) * 128
    tm = min(tm, n_pad)
    n_pad = pl.cdiv(N, tm) * tm

    # bf16 operands for the memory-bound matmul; LN params / stats stay f32.
    x = tokens.astype(compute_dtype)
    if n_pad != N:
        x = jnp.pad(x, ((0, 0), (0, n_pad - N), (0, 0)))
    w = conv_w.astype(compute_dtype)                     # (C, D)
    g2 = ln_gamma.reshape(C, 1).astype(jnp.float32)
    b2 = ln_beta.reshape(C, 1).astype(jnp.float32)

    grid = (B, n_pad // tm)
    out = pl.pallas_call(
        _neck_kernel,
        out_shape=jax.ShapeDtypeStruct((B, C, n_pad), jnp.float32),
        grid_spec=pltpu.PrefetchScalarGridSpec(
            num_scalar_prefetch=0,
            grid=grid,
            in_specs=[
                pl.BlockSpec((None, tm, D), lambda b, i: (b, i, 0)),  # tokens
                pl.BlockSpec((C, D), lambda b, i: (0, 0)),            # conv W
                pl.BlockSpec((C, 1), lambda b, i: (0, 0)),            # gamma
                pl.BlockSpec((C, 1), lambda b, i: (0, 0)),            # beta
            ],
            out_specs=pl.BlockSpec((None, C, tm), lambda b, i: (b, 0, i)),
        ),
        compiler_params=pltpu.CompilerParams(
            dimension_semantics=("parallel", "parallel")),
    )(x, w, g2, b2)

    if n_pad != N:
        out = out[:, :, :N]
    # (B, C, N) -> (B, C, S, S, S): pure reshape, the transpose was fused into
    # the kernel's channel-major output tiles.
    return out.reshape(B, C, spatial, spatial, spatial)


def _reference(tokens, conv_w, ln_gamma, ln_beta, spatial,
               compute_dtype=jnp.bfloat16):
    B, N, D = tokens.shape
    C = conv_w.shape[0]
    z = jnp.dot(tokens.reshape(B * N, D).astype(compute_dtype),
                conv_w.T.astype(compute_dtype),
                preferred_element_type=jnp.float32)           # 1x1x1 conv, no bias
    u = z.mean(-1, keepdims=True)
    var = ((z - u) ** 2).mean(-1, keepdims=True)
    y = (z - u) / jnp.sqrt(var + LN_EPS) * ln_gamma + ln_beta  # LayerNorm3d
    return y.reshape(B, spatial, spatial, spatial, C).transpose(0, 4, 1, 2, 3)


if __name__ == "__main__":
    # Small-shape analog of the module: DINO_EMBED_DIM=1024 -> 128,
    # img_size=64 -> S = 64 // 2**4 = 4 (N = 64 tokens), out_chans=256 -> 32.
    B, S, D, C = 2, 4, 128, 32
    N = S ** 3

    key = jax.random.PRNGKey(0)
    k_tok, k_w = jax.random.split(key)
    tokens = jax.random.normal(k_tok, (B, N, D), dtype=jnp.float32)
    conv_w = jax.random.normal(k_w, (C, D), dtype=jnp.float32) * 0.02  # Conv3d(D, C, 1, bias=False)
    ln_gamma = jnp.ones((C,), dtype=jnp.float32)                       # LayerNorm3d weight
    ln_beta = jnp.zeros((C,), dtype=jnp.float32)                       # LayerNorm3d bias

    out = dinov2_neck(tokens, conv_w, ln_gamma, ln_beta, S)
    jax.block_until_ready(out)

    ref = _reference(tokens, conv_w, ln_gamma, ln_beta, S)
    assert out.shape == (B, C, S, S, S)
    assert jnp.allclose(out, ref, atol=1e-3, rtol=1e-3)

    print("KERNEL_OK")
</pallas_src>

<mosaic_0001>
module attributes {stable_mosaic.version = 11 : i64} {
  func.func @_neck_kernel(%arg0: i32, %arg1: i32, %arg2: memref<1x128x128xbf16, #tpu.memory_space<vmem>>, %arg3: memref<32x128xbf16, #tpu.memory_space<vmem>>, %arg4: memref<32x1xf32, #tpu.memory_space<vmem>>, %arg5: memref<32x1xf32, #tpu.memory_space<vmem>>, %arg6: memref<1x32x128xf32, #tpu.memory_space<vmem>>) attributes {dimension_semantics = [#tpu.dimension_semantics<parallel>, #tpu.dimension_semantics<parallel>], iteration_bounds = array<i64: 2, 1>, scalar_prefetch = 0 : i64, scratch_operands = 0 : i64, tpu.core_type = #tpu.core_type<tc>, window_params = [{transform_indices = @transform_0, window_bounds = array<i64: 1, 128, 128>}, {pipeline_mode = #tpu.pipeline_mode<synchronous>, transform_indices = @transform_1, window_bounds = array<i64: 32, 128>}, {pipeline_mode = #tpu.pipeline_mode<synchronous>, transform_indices = @transform_2, window_bounds = array<i64: 32, 1>}, {pipeline_mode = #tpu.pipeline_mode<synchronous>, transform_indices = @transform_3, window_bounds = array<i64: 32, 1>}, {transform_indices = @transform_4, window_bounds = array<i64: 1, 32, 128>}]} {
    %c0 = arith.constant 0 : index
    %c0_0 = arith.constant 0 : index
    %0 = vector.load %arg3[%c0, %c0_0] : memref<32x128xbf16, #tpu.memory_space<vmem>>, vector<32x128xbf16>
    %c0_1 = arith.constant 0 : index
    %c0_2 = arith.constant 0 : index
    %c0_3 = arith.constant 0 : index
    %1 = vector.load %arg2[%c0_1, %c0_2, %c0_3] : memref<1x128x128xbf16, #tpu.memory_space<vmem>>, vector<1x128x128xbf16>
    %2 = vector.shape_cast %1 : vector<1x128x128xbf16> to vector<128x128xbf16>
    %cst = arith.constant dense<0.000000e+00> : vector<32x128xf32>
    %3 = tpu.matmul %0, %2, %cst {dimension_numbers = #tpu.dot_dimension_numbers<[1], [1], [0], [0], [0, 0, 1, 0], [], []>} : vector<32x128xbf16>, vector<128x128xbf16>, vector<32x128xf32> -> vector<32x128xf32>
    %cst_4 = arith.constant dense<0.000000e+00> : vector<128xf32>
    %4 = vector.multi_reduction <add>, %3, %cst_4 [0] : vector<32x128xf32> to vector<128xf32>
    %5 = vector.shape_cast %4 : vector<128xf32> to vector<1x128xf32>
    %cst_5 = arith.constant 3.125000e-02 : f32
    %6 = vector.broadcast %cst_5 : f32 to vector<1x128xf32>
    %7 = arith.mulf %5, %6 : vector<1x128xf32>
    %8 = arith.mulf %3, %3 : vector<32x128xf32>
    %cst_6 = arith.constant dense<0.000000e+00> : vector<128xf32>
    %9 = vector.multi_reduction <add>, %8, %cst_6 [0] : vector<32x128xf32> to vector<128xf32>
    %10 = vector.shape_cast %9 : vector<128xf32> to vector<1x128xf32>
    %cst_7 = arith.constant 3.125000e-02 : f32
    %11 = vector.broadcast %cst_7 : f32 to vector<1x128xf32>
    %12 = arith.mulf %10, %11 : vector<1x128xf32>
    %13 = arith.mulf %7, %7 : vector<1x128xf32>
    %14 = arith.subf %12, %13 : vector<1x128xf32>
    %cst_8 = arith.constant 0.000000e+00 : f32
    %15 = vector.broadcast %cst_8 : f32 to vector<1x128xf32>
    %16 = arith.maximumf %14, %15 : vector<1x128xf32>
    %cst_9 = arith.constant 9.99999997E-7 : f32
    %17 = vector.broadcast %cst_9 : f32 to vector<1x128xf32>
    %18 = arith.addf %16, %17 : vector<1x128xf32>
    %19 = math.rsqrt %18 : vector<1x128xf32>
    %c0_10 = arith.constant 0 : index
    %c0_11 = arith.constant 0 : index
    %20 = vector.load %arg4[%c0_10, %c0_11] : memref<32x1xf32, #tpu.memory_space<vmem>>, vector<32x1xf32>
    %21 = vector.broadcast %19 : vector<1x128xf32> to vector<32x128xf32>
    %22 = vector.broadcast %20 : vector<32x1xf32> to vector<32x128xf32>
    %23 = arith.mulf %21, %22 : vector<32x128xf32>
    %24 = arith.mulf %3, %23 : vector<32x128xf32>
    %c0_12 = arith.constant 0 : index
    %c0_13 = arith.constant 0 : index
    %25 = vector.load %arg5[%c0_12, %c0_13] : memref<32x1xf32, #tpu.memory_space<vmem>>, vector<32x1xf32>
    %26 = vector.broadcast %7 : vector<1x128xf32> to vector<32x128xf32>
    %27 = arith.mulf %26, %23 : vector<32x128xf32>
    %28 = vector.broadcast %25 : vector<32x1xf32> to vector<32x128xf32>
    %29 = arith.subf %28, %27 : vector<32x128xf32>
    %30 = arith.addf %24, %29 : vector<32x128xf32>
    %c0_14 = arith.constant 0 : index
    %c0_15 = arith.constant 0 : index
    %c0_16 = arith.constant 0 : index
    %31 = vector.load %arg6[%c0_14, %c0_15, %c0_16] : memref<1x32x128xf32, #tpu.memory_space<vmem>>, vector<1x32x128xf32>
    %32 = vector.shape_cast %31 : vector<1x32x128xf32> to vector<32x128xf32>
    %33 = vector.shape_cast %30 : vector<32x128xf32> to vector<1x32x128xf32>
    tpu.vector_store %arg6[%c0_14, %c0_15, %c0_16], %33 {strides = array<i32>} : memref<1x32x128xf32, #tpu.memory_space<vmem>>, vector<1x32x128xf32>,
    return
  }
  func.func @transform_0(%arg0: i32, %arg1: i32) -> (i32, i32, i32) {
    %c0_i32 = arith.constant 0 : i32
    %c0_i32_0 = arith.constant 0 : i32
    return %arg0, %arg1, %c0_i32 : i32, i32, i32
  }
  func.func @transform_1(%arg0: i32, %arg1: i32) -> (i32, i32) {
    %c0_i32 = arith.constant 0 : i32
    %c0_i32_0 = arith.constant 0 : i32
    %c0_i32_1 = arith.constant 0 : i32
    return %c0_i32, %c0_i32_0 : i32, i32
  }
  func.func @transform_2(%arg0: i32, %arg1: i32) -> (i32, i32) {
    %c0_i32 = arith.constant 0 : i32
    %c0_i32_0 = arith.constant 0 : i32
    %c0_i32_1 = arith.constant 0 : i32
    return %c0_i32, %c0_i32_0 : i32, i32
  }
  func.func @transform_3(%arg0: i32, %arg1: i32) -> (i32, i32) {
    %c0_i32 = arith.constant 0 : i32
    %c0_i32_0 = arith.constant 0 : i32
    %c0_i32_1 = arith.constant 0 : i32
    return %c0_i32, %c0_i32_0 : i32, i32
  }
  func.func @transform_4(%arg0: i32, %arg1: i32) -> (i32, i32, i32) {
    %c0_i32 = arith.constant 0 : i32
    %c0_i32_0 = arith.constant 0 : i32
    return %arg0, %c0_i32, %arg1 : i32, i32, i32
  }
}

</mosaic_0001>

<llo_original>
// kernel: tpu_custom_call.1
$region0: #{tpu_custom_call.1}
  #allocation0 [shape = 'u32[]', space=smem, size = 0x4, offset = 0x4, fixed_abs, tag = 'smem constant byte address 0x4 - core index']
  #allocation1 [shape = 'u32[144,128]{1,0:T(1,128)}', space=vmem, size = 0x12000, scoped, tag = 'internal scratch']
  %s0 = inlined_call_operand.hbm [shape: bf16[2,128,128], index: 0, kind: input, shape index: {}]
  %s1 = inlined_call_operand.vmem [shape: bf16[32,128], index: 1, kind: input, shape index: {}]
  %s2 = inlined_call_operand.vmem [shape: f32[32,1], index: 2, kind: input, shape index: {}]
  %s3 = inlined_call_operand.vmem [shape: f32[32,1], index: 3, kind: input, shape index: {}]
  %s4 = inlined_call_operand.hbm [shape: f32[2,32,128], index: 4, kind: output, shape index: {}]
  %s5 = sld [smem:[#allocation0]]
  $region53: #{tpu_custom_call.1} parent=0
    _
  %s7 = ssub.s32 1, %s5
  %s8 = scalar_select 0, %s7, %s5
  $region1: #{tpu_custom_call.1} parent=0
    #allocation2 [shape = 'u8[65536]{0}', space=vmem, size = 0x10000, scoped, tag = 'input window, operand 0']
    #allocation3 [shape = 's32[2]{0}', space=sflag, size = 0x8, scoped, tag = 'scoped memory for tpu_custom_call.1']
    #allocation4 [shape = 's32[2]{0}', space=sflag, size = 0x8, scoped, tag = 'scoped memory for tpu_custom_call.1']
    #allocation5 [shape = 'u8[32768]{0}', space=vmem, size = 0x8000, scoped, tag = 'output window, operand 0']
    %9 = vsyncpa [#allocation3], 0
    %s10 = scalar_lea.sflag [#allocation3], 1
    %11 = vsyncpa %s10, 0
    %12 = vsyncpa [#allocation4], 0
    %s13 = scalar_lea.sflag [#allocation4], 1
    %14 = vsyncpa %s13, 0
    loop: start=0, step=1, limit=4
    $region2: #{tpu_custom_call.1} parent=1 // loop_pre_header
      _
    $region3: #{tpu_custom_call.1} parent=1 // loop_header
      %s16 = sphi 0, %s20
      %p17 = scmp.ge.s32.totalorder %s16, 4
      %s23 = sphi 0, %s35
      %s24 = sphi 0, %s31
      %s25 = sphi 0, %s23
      %s26 = sphi 0, %s24
      %s27 = sphi 0, %s25
      %s28 = sphi 0, %s26
      %s40 = sphi 0, %s42
      %s43 = sphi 0, %s40
      %s44 = sphi 0, %s43
      %s60 = sphi 0, %s44
      %s64 = sphi 0, %s64
      %s66 = sphi 0, %s64
      %s67 = sphi 0, %s66
      %s81 = sphi 0, %s67
      %s85 = sphi 0, %s85
      %s87 = sphi 0, %s85
      %s88 = sphi 0, %s87
      %s102 = sphi 0, %s88
      %s106 = sphi 0, %s106
      %s108 = sphi 0, %s106
      %s109 = sphi 0, %s108
      %s123 = sphi 0, %s109
      %s131 = sphi 0, %s133
      %s134 = sphi 0, %s131
      %s135 = sphi 0, %s134
      %s151 = sphi 0, %s135
    $region4: #{tpu_custom_call.1} parent=1 // loop_header_branch
      %19 = sbr.rel (%p17) target = $region8
    $region5: #{tpu_custom_call.1} parent=1 // loop_body
      %s21 = ssub.s32 %s16, 1
      %s22 = ssub.s32 %s16, 2
      %s29 = sadd.s32 1, %s24
      %p30 = scmp.ge.s32.totalorder %s29, 1
      %s31 = scalar_select %p30, 0, %s29
      %s32 = sadd.s32 1, %s23
      %s33 = scalar_select %p30, %s32, %s23
      %p34 = scmp.ge.s32.totalorder %s33, 2
      %s35 = scalar_select %p34, 0, %s33
      %s36 = ssub.s32 %s23, %s35
      %s37 = ssub.s32 %s24, %s31
      %s38 = sor.u32 %s36, %s37
      %p39 = scmp.eq.s32.totalorder %s38, 0
      %s41 = sadd.s32 %s40, 1
      %s42 = scalar_select %p39, %s40, %s41
      %p45 = pneg %p39
      %p46 = scmp.eq.s32.totalorder %s16, 1
      %p47 = por %p45, %p46
      %p48 = scmp.ne.s32.totalorder %s40, %s43
      %p49 = scmp.eq.s32.totalorder %s16, 0
      %p50 = por %p48, %p49
      %p51 = scmp.ne.s32.totalorder %s40, %s43
      %p52 = scmp.eq.s32.totalorder %s21, 1
      %p53 = por %p51, %p52
      %p54 = scmp.ne.s32.totalorder %s43, %s44
      %p55 = scmp.eq.s32.totalorder %s21, 0
      %p56 = por %p54, %p55
      %p57 = scmp.ne.s32.totalorder %s43, %s44
      %p58 = scmp.eq.s32.totalorder %s22, 1
      %p59 = por %p57, %p58
      %p61 = scmp.ne.s32.totalorder %s44, %s60
      %p62 = scmp.eq.s32.totalorder %s22, 0
      %p63 = por %p61, %p62
      %s65 = sadd.s32 %s64, 1
      %p68 = scmp.eq.s32.totalorder %s16, 1
      %p69 = scmp.ne.s32.totalorder %s64, %s66
      %p70 = scmp.eq.s32.totalorder %s16, 0
      %p71 = por %p69, %p70
      %p72 = scmp.ne.s32.totalorder %s64, %s66
      %p73 = scmp.eq.s32.totalorder %s21, 1
      %p74 = por %p72, %p73
      %p75 = scmp.ne.s32.totalorder %s66, %s67
      %p76 = scmp.eq.s32.totalorder %s21, 0
      %p77 = por %p75, %p76
      %p78 = scmp.ne.s32.totalorder %s66, %s67
      %p79 = scmp.eq.s32.totalorder %s22, 1
      %p80 = por %p78, %p79
      %p82 = scmp.ne.s32.totalorder %s67, %s81
      %p83 = scmp.eq.s32.totalorder %s22, 0
      %p84 = por %p82, %p83
      %s86 = sadd.s32 %s85, 1
      %p89 = scmp.eq.s32.totalorder %s16, 1
      %p90 = scmp.ne.s32.totalorder %s85, %s87
      %p91 = scmp.eq.s32.totalorder %s16, 0
      %p92 = por %p90, %p91
      %p93 = scmp.ne.s32.totalorder %s85, %s87
      %p94 = scmp.eq.s32.totalorder %s21, 1
      %p95 = por %p93, %p94
      %p96 = scmp.ne.s32.totalorder %s87, %s88
      %p97 = scmp.eq.s32.totalorder %s21, 0
      %p98 = por %p96, %p97
      %p99 = scmp.ne.s32.totalorder %s87, %s88
      %p100 = scmp.eq.s32.totalorder %s22, 1
      %p101 = por %p99, %p100
      %p103 = scmp.ne.s32.totalorder %s88, %s102
      %p104 = scmp.eq.s32.totalorder %s22, 0
      %p105 = por %p103, %p104
      %s107 = sadd.s32 %s106, 1
      %p110 = scmp.eq.s32.totalorder %s16, 1
      %p111 = scmp.ne.s32.totalorder %s106, %s108
      %p112 = scmp.eq.s32.totalorder %s16, 0
      %p113 = por %p111, %p112
      %p114 = scmp.ne.s32.totalorder %s106, %s108
      %p115 = scmp.eq.s32.totalorder %s21, 1
      %p116 = por %p114, %p115
      %p117 = scmp.ne.s32.totalorder %s108, %s109
      %p118 = scmp.eq.s32.totalorder %s21, 0
      %p119 = por %p117, %p118
      %p120 = scmp.ne.s32.totalorder %s108, %s109
      %p121 = scmp.eq.s32.totalorder %s22, 1
      %p122 = por %p120, %p121
      %p124 = scmp.ne.s32.totalorder %s109, %s123
      %p125 = scmp.eq.s32.totalorder %s22, 0
      %p126 = por %p124, %p125
      %s127 = ssub.s32 %s23, %s35
      %s128 = ssub.s32 %s24, %s31
      %s129 = sor.u32 %s127, %s128
      %p130 = scmp.eq.s32.totalorder %s129, 0
      %s132 = sadd.s32 %s131, 1
      %s133 = scalar_select %p130, %s131, %s132
      %p136 = pneg %p130
      %p137 = scmp.eq.s32.totalorder %s16, 1
      %p138 = por %p136, %p137
      %p139 = scmp.ne.s32.totalorder %s131, %s134
      %p140 = scmp.eq.s32.totalorder %s16, 0
      %p141 = por %p139, %p140
      %p142 = scmp.ne.s32.totalorder %s131, %s134
      %p143 = scmp.eq.s32.totalorder %s21, 1
      %p144 = por %p142, %p143
      %p145 = scmp.ne.s32.totalorder %s134, %s135
      %p146 = scmp.eq.s32.totalorder %s21, 0
      %p147 = por %p145, %p146
      %p148 = scmp.ne.s32.totalorder %s134, %s135
      %p149 = scmp.eq.s32.totalorder %s22, 1
      %p150 = por %p148, %p149
      %p152 = scmp.ne.s32.totalorder %s135, %s151
      %p153 = scmp.eq.s32.totalorder %s22, 0
      %p154 = por %p152, %p153
      %p155 = scmp.le.s32.totalorder 1, %s16
      %p156 = scmp.lt.s32.totalorder %s16, 3
      %p157 = pnand %p155, %p156
      %p158 = pneg %p157
      // Predicated region
      $region9: #{tpu_custom_call.1} parent=5 // pred_check
        _
      $region10: #{tpu_custom_call.1} parent=5 // pred_check_branch
        %160 = sbr.rel (%p157) target = $region12
      $region11: #{tpu_custom_call.1} parent=5 // pred_region
        %s161 = ssub.s32 %s16, 1
        // Predicated region
        $region13: #{tpu_custom_call.1} parent=11 // pred_check
          %p162 = pneg %p77
        $region14: #{tpu_custom_call.1} parent=11 // pred_check_branch
          %164 = sbr.rel (%p162) target = $region16
        $region15: #{tpu_custom_call.1} parent=11 // pred_region
          _
        $region16: #{tpu_custom_call.1} parent=11 // pred_fallthru
          _
        // Predicated region
        $region17: #{tpu_custom_call.1} parent=11 // pred_check
          %p165 = pneg %p98
        $region18: #{tpu_custom_call.1} parent=11 // pred_check_branch
          %167 = sbr.rel (%p165) target = $region20
        $region19: #{tpu_custom_call.1} parent=11 // pred_region
          _
        $region20: #{tpu_custom_call.1} parent=11 // pred_fallthru
          _
        // Predicated region
        $region21: #{tpu_custom_call.1} parent=11 // pred_check
          %p168 = pneg %p119
        $region22: #{tpu_custom_call.1} parent=11 // pred_check_branch
          %170 = sbr.rel (%p168) target = $region24
        $region23: #{tpu_custom_call.1} parent=11 // pred_region
          _
        $region24: #{tpu_custom_call.1} parent=11 // pred_fallthru
          _
      $region12: #{tpu_custom_call.1} parent=5 // pred_fallthru
        _
      %p171 = scmp.lt.s32.totalorder %s16, 2
      // Predicated region
      $region25: #{tpu_custom_call.1} parent=5 // pred_check
        %p172 = pneg %p171
      $region26: #{tpu_custom_call.1} parent=5 // pred_check_branch
        %174 = sbr.rel (%p172) target = $region28
      $region27: #{tpu_custom_call.1} parent=5 // pred_region
        // Predicated region
        $region29: #{tpu_custom_call.1} parent=27 // pred_check
          %p175 = pneg %p50
        $region30: #{tpu_custom_call.1} parent=27 // pred_check_branch
          %177 = sbr.rel (%p175) target = $region32
        $region31: #{tpu_custom_call.1} parent=27 // pred_region
          %s178 = sand.u32 %s40, 1
          %s179 = scalar_lea.sflag [#allocation3], %s178
          %s180 = sand.u32 %s40, 1
          %s181 = smul.addr %s180, 64
          %s182 = scalar_lea.vmem [#allocation2], %s181
          %s183 = smul.u32 16, %s24
          %s185 = ssub.s32 1024, 1024
          %186 = vsyncadd %s179, %s185
          %s187 = smul.addr %s23, 16
          %s188 = sadd.s32 %s183, %s187
          %s189 = smul.addr %s188, 64
          %s190 = scalar_lea.hbm %s0, %s189
          %s191 = sshll.u32 %s182, 4
          %s192 = int_to_ptr.vmem [resolvable:$true] %s191
          %197 = dma.hbm_to_vmem [thread:$0]  %s190, 1024, %s192, %s179, 64, 64, 4
        $region32: #{tpu_custom_call.1} parent=27 // pred_fallthru
          _
      $region28: #{tpu_custom_call.1} parent=5 // pred_fallthru
        _
      %p198 = scmp.le.s32.totalorder 1, %s16
      %p199 = scmp.lt.s32.totalorder %s16, 3
      %p200 = pnand %p198, %p199
      %p201 = pneg %p200
      // Predicated region
      $region33: #{tpu_custom_call.1} parent=5 // pred_check
        _
      $region34: #{tpu_custom_call.1} parent=5 // pred_check_branch
        %203 = sbr.rel (%p200) target = $region36
      $region35: #{tpu_custom_call.1} parent=5 // pred_region
        %s204 = ssub.s32 %s16, 1
        %s205 = sand.u32 %s43, 1
        %s206 = scalar_lea.sflag [#allocation3], %s205
        %s207 = sand.u32 %s43, 1
        %s208 = smul.addr %s207, 64
        %s209 = scalar_lea.vmem [#allocation2], %s208
        // Predicated region
        $region37: #{tpu_custom_call.1} parent=35 // pred_check
          %p210 = pneg %p56
        $region38: #{tpu_custom_call.1} parent=35 // pred_check_branch
          %212 = sbr.rel (%p210) target = $region40
        $region39: #{tpu_custom_call.1} parent=35 // pred_region
          %213 = dma.done %s206, 1024
        $region40: #{tpu_custom_call.1} parent=35 // pred_fallthru
          _
        %s214 = sand.u32 %s43, 1
        %s215 = scalar_lea.sflag [#allocation3], %s214
        %s216 = sand.u32 %s43, 1
        %s217 = smul.addr %s216, 64
        %s218 = scalar_lea.vmem [#allocation2], %s217
        %p219 = pneg %p56
        %p220 = pneg %p53
        %p221 = pneg %p77
        %p222 = pneg %p74
        %p223 = pneg %p98
        %p224 = pneg %p95
        %p225 = pneg %p119
        %p226 = pneg %p116
        %p227 = pneg %p147
        %p228 = pneg %p144
        %s229 = sand.u32 %s134, 1
        %s230 = scalar_lea.sflag [#allocation4], %s229
        %s231 = sand.u32 %s134, 1
        %s232 = smul.addr %s231, 32
        %s233 = scalar_lea.vmem [#allocation5], %s232
        %s234 = smul.u32 16, %s26
        %v236 = vld [vmem:[%s1] sm:$0xf]
        %v237 = vld [vmem:[%s1 + $0x4] sm:$0xf]
        %v238 = vld [vmem:[%s1 + $0x8] sm:$0xf]
        %v239 = vld [vmem:[%s1 + $0xc] sm:$0xf]
        %v240 = vld [vmem:[%s209] sm:$0xf]
        %v241 = vld [vmem:[%s209 + $0x4] sm:$0xf]
        %v242 = vld [vmem:[%s209 + $0x8] sm:$0xf]
        %v243 = vld [vmem:[%s209 + $0xc] sm:$0xf]
        %v244 = vld [vmem:[%s209 + $0x10] sm:$0xf]
        %v245 = vld [vmem:[%s209 + $0x14] sm:$0xf]
        %v246 = vld [vmem:[%s209 + $0x18] sm:$0xf]
        %v247 = vld [vmem:[%s209 + $0x1c] sm:$0xf]
        %v248 = vld [vmem:[%s209 + $0x20] sm:$0xf]
        %v249 = vld [vmem:[%s209 + $0x24] sm:$0xf]
        %v250 = vld [vmem:[%s209 + $0x28] sm:$0xf]
        %v251 = vld [vmem:[%s209 + $0x2c] sm:$0xf]
        %v252 = vld [vmem:[%s209 + $0x30] sm:$0xf]
        %v253 = vld [vmem:[%s209 + $0x34] sm:$0xf]
        %v254 = vld [vmem:[%s209 + $0x38] sm:$0xf]
        %v255 = vld [vmem:[%s209 + $0x3c] sm:$0xf]
        %v260 = vunpack.c.l.b16 %v236
        %v261 = vunpack.c.l.b16 %v237
        %v262 = vunpack.c.l.b16 %v238
        %v263 = vunpack.c.l.b16 %v239
        %v264 = vpack.c.b16 %v261, %v260
        %v265 = vpack.c.b16 %v263, %v262
        %v284 = vunpack.c.l.b16 %v240
        %v285 = vunpack.c.l.b16 %v241
        %v286 = vunpack.c.l.b16 %v242
        %v287 = vunpack.c.l.b16 %v243
        %v288 = vunpack.c.l.b16 %v244
        %v289 = vunpack.c.l.b16 %v245
        %v290 = vunpack.c.l.b16 %v246
        %v291 = vunpack.c.l.b16 %v247
        %v292 = vunpack.c.l.b16 %v248
        %v293 = vunpack.c.l.b16 %v249
        %v294 = vunpack.c.l.b16 %v250
        %v295 = vunpack.c.l.b16 %v251
        %v296 = vunpack.c.l.b16 %v252
        %v297 = vunpack.c.l.b16 %v253
        %v298 = vunpack.c.l.b16 %v254
        %v299 = vunpack.c.l.b16 %v255
        %v300 = vpack.c.b16 %v285, %v284
        %v301 = vpack.c.b16 %v287, %v286
        %v302 = vpack.c.b16 %v289, %v288
        %v303 = vpack.c.b16 %v291, %v290
        %v304 = vpack.c.b16 %v293, %v292
        %v305 = vpack.c.b16 %v295, %v294
        %v306 = vpack.c.b16 %v297, %v296
        %v307 = vpack.c.b16 %v299, %v298
        %316 = vmatprep.subr.bf16.mxu0 0
        %317 = vmatpush1.bf16.xpose.msra.mxu0 %v300
        %318 = vmatprep.subr.bf16.mxu0 0
        %319 = vmatpush1.bf16.xpose.msra.mxu0 %v301
        %320 = vmatprep.subr.bf16.mxu0 0
        %321 = vmatpush1.bf16.xpose.msra.mxu0 %v302
        %322 = vmatprep.subr.bf16.mxu0 0
        %323 = vmatpush1.bf16.xpose.msra.mxu0 %v303
        %324 = vmatprep.subr.bf16.mxu0 0
        %325 = vmatpush1.bf16.xpose.msra.mxu0 %v304
        %326 = vmatprep.subr.bf16.mxu0 0
        %327 = vmatpush1.bf16.xpose.msra.mxu0 %v305
        %328 = vmatprep.subr.bf16.mxu0 0
        %329 = vmatpush1.bf16.xpose.msra.mxu0 %v306
        %330 = vmatprep.subr.bf16.mxu0 0
        %331 = vmatpush1.bf16.xpose.msra.mxu0 %v307
        %332 = vmatprep.subr.bf16.mxu0 0
        %333 = vmatpush1.bf16.xpose.msra.mxu0 0
        %334 = vmatprep.subr.bf16.mxu0 0
        %335 = vmatpush1.bf16.xpose.msra.mxu0 0
        %336 = vmatprep.subr.bf16.mxu0 0
        %337 = vmatpush1.bf16.xpose.msra.mxu0 0
        %338 = vmatprep.subr.bf16.mxu0 0
        %339 = vmatpush1.bf16.xpose.msra.mxu0 0
        %340 = vmatprep.subr.bf16.mxu0 0
        %341 = vmatpush1.bf16.xpose.msra.mxu0 0
        %342 = vmatprep.subr.bf16.mxu0 0
        %343 = vmatpush1.bf16.xpose.msra.mxu0 0
        %344 = vmatprep.subr.bf16.mxu0 0
        %345 = vmatpush1.bf16.xpose.msra.mxu0 0
        %346 = vmatprep.subr.bf16.mxu0 0
        %347 = vmatpush1.bf16.xpose.msra.mxu0 0
        %348 = vmatprep.mubr.bf16.mxu0 0
        %349 = vmatmul.mubr.bf16.gmra.mrb[0].mxu0 %v264
        %v350 = vpop.f32.mrb[0].mxu0
        %v351 = vadd.f32 0.0, %v350
        %v352 = vpop.f32.mrb[0].mxu0
        %v353 = vpop.f32.mrb[0].mxu0
        %v354 = vadd.f32 0.0, %v353
        %v355 = vpop.f32.mrb[0].mxu0
        %356 = vmatprep.mubr.bf16.mxu0 0
        %357 = vmatmul.mubr.bf16.gmra.mrb[0].mxu0 %v265
        %v358 = vpop.f32.mrb[0].mxu0
        %v359 = vadd.f32 0.0, %v358
        %v360 = vpop.f32.mrb[0].mxu0
        %v361 = vpop.f32.mrb[0].mxu0
        %v362 = vadd.f32 0.0, %v361
        %v363 = vpop.f32.mrb[0].mxu0
        %364 = vdwg.mxu0
        %v365 = vadd.f32 %v351, %v354
        %v366 = vadd.f32 %v365, %v359
        %v367 = vadd.f32 %v366, %v362
        %v368 = vrot.slane %v367, 4
        %v369 = vadd.f32 %v367, %v368
        %v370 = vrot.slane %v369, 2
        %v371 = vadd.f32 %v369, %v370
        %v372 = vrot.slane %v371, 1
        %v373 = vadd.f32 %v371, %v372
        %v374 = vmul.f32 %v373, 0.03125
        %v375 = vmul.f32 %v351, %v351
        %v376 = vmul.f32 %v354, %v354
        %v377 = vmul.f32 %v359, %v359
        %v378 = vmul.f32 %v362, %v362
        %v379 = vadd.f32 %v375, %v376
        %v380 = vadd.f32 %v379, %v377
        %v381 = vadd.f32 %v380, %v378
        %v382 = vrot.slane %v381, 4
        %v383 = vadd.f32 %v381, %v382
        %v384 = vrot.slane %v383, 2
        %v385 = vadd.f32 %v383, %v384
        %v386 = vrot.slane %v385, 1
        %v387 = vadd.f32 %v385, %v386
        %v388 = vmul.f32 %v387, 0.03125
        %v389 = vmul.f32 %v374, %v374
        %v390 = vsub.f32 %v388, %v389
        %v391 = vmax.f32 %v390, 0.0
        %v392 = vadd.f32 %v391, 1e-06
        %v393 = vrsqrt.pop %v392
        %v394 = vld [vmem:[%s2] sm:$0xff]
        %v395 = vld [vmem:[%s2 + $0x8] sm:$0xff]
        %v396 = vld [vmem:[%s2 + $0x10] sm:$0xff]
        %v397 = vld [vmem:[%s2 + $0x18] sm:$0xff]
        %399 = vset.pattern.permute.xlu0 0
        %400 = vperm.xlu0 %399, %v394
        %v401 = vpop.permute.xlu0 %400
        %404 = vset.pattern.permute.xlu0 0
        %405 = vperm.xlu0 %404, %v395
        %v406 = vpop.permute.xlu0 %405
        %409 = vset.pattern.permute.xlu0 0
        %410 = vperm.xlu0 %409, %v396
        %v411 = vpop.permute.xlu0 %410
        %414 = vset.pattern.permute.xlu0 0
        %415 = vperm.xlu0 %414, %v397
        %v416 = vpop.permute.xlu0 %415
        %v418 = vmul.f32 %v393, %v401
        %v419 = vmul.f32 %v393, %v406
        %v420 = vmul.f32 %v393, %v411
        %v421 = vmul.f32 %v393, %v416
        %v422 = vmul.f32 %v351, %v418
        %v423 = vmul.f32 %v354, %v419
        %v424 = vmul.f32 %v359, %v420
        %v425 = vmul.f32 %v362, %v421
        %v426 = vld [vmem:[%s3] sm:$0xff]
        %v427 = vld [vmem:[%s3 + $0x8] sm:$0xff]
        %v428 = vld [vmem:[%s3 + $0x10] sm:$0xff]
        %v429 = vld [vmem:[%s3 + $0x18] sm:$0xff]
        %v430 = vmul.f32 %v374, %v418
        %v431 = vmul.f32 %v374, %v419
        %v432 = vmul.f32 %v374, %v420
        %v433 = vmul.f32 %v374, %v421
        %435 = vset.pattern.permute.xlu0 0
        %436 = vperm.xlu0 %435, %v426
        %v437 = vpop.permute.xlu0 %436
        %440 = vset.pattern.permute.xlu0 0
        %441 = vperm.xlu0 %440, %v427
        %v442 = vpop.permute.xlu0 %441
        %445 = vset.pattern.permute.xlu0 0
        %446 = vperm.xlu0 %445, %v428
        %v447 = vpop.permute.xlu0 %446
        %450 = vset.pattern.permute.xlu0 0
        %451 = vperm.xlu0 %450, %v429
        %v452 = vpop.permute.xlu0 %451
        %v454 = vsub.f32 %v437, %v430
        %v455 = vsub.f32 %v442, %v431
        %v456 = vsub.f32 %v447, %v432
        %v457 = vsub.f32 %v452, %v433
        %v458 = vadd.f32 %v422, %v454
        %v459 = vadd.f32 %v423, %v455
        %v460 = vadd.f32 %v424, %v456
        %v461 = vadd.f32 %v425, %v457
        %462 = vst [vmem:[%s233] sm:$0xff] %v458
        %463 = vst [vmem:[%s233 + $0x8] sm:$0xff] %v459
        %464 = vst [vmem:[%s233 + $0x10] sm:$0xff] %v460
        %465 = vst [vmem:[%s233 + $0x18] sm:$0xff] %v461
        %s466 = sand.u32 %s134, 1
        %s467 = scalar_lea.sflag [#allocation4], %s466
        %s468 = sand.u32 %s134, 1
        %s469 = smul.addr %s468, 32
        %s470 = scalar_lea.vmem [#allocation5], %s469
        // Predicated region
        $region41: #{tpu_custom_call.1} parent=35 // pred_check
          %p471 = pneg %p144
        $region42: #{tpu_custom_call.1} parent=35 // pred_check_branch
          %473 = sbr.rel (%p471) target = $region44
        $region43: #{tpu_custom_call.1} parent=35 // pred_region
          %s475 = ssub.s32 512, 512
          %476 = vsyncadd %s467, %s475
          %s477 = smul.addr %s25, 4
          %s478 = sadd.s32 %s26, %s477
          %s479 = smul.addr %s478, 128
          %s480 = scalar_lea.hbm %s4, %s479
          %s481 = sshll.u32 %s470, 4
          %s482 = int_to_ptr.vmem [resolvable:$true] %s481
          %487 = dma.vmem_to_hbm [thread:$0]  %s482, 512, %s480, %s467, 128, 128, 8
        $region44: #{tpu_custom_call.1} parent=35 // pred_fallthru
          _
      $region36: #{tpu_custom_call.1} parent=5 // pred_fallthru
        _
      %p488 = scmp.le.s32.totalorder 2, %s16
      // Predicated region
      $region45: #{tpu_custom_call.1} parent=5 // pred_check
        %p489 = pneg %p488
      $region46: #{tpu_custom_call.1} parent=5 // pred_check_branch
        %491 = sbr.rel (%p489) target = $region48
      $region47: #{tpu_custom_call.1} parent=5 // pred_region
        %s492 = ssub.s32 %s16, 2
        // Predicated region
        $region49: #{tpu_custom_call.1} parent=47 // pred_check
          %p493 = pneg %p150
        $region50: #{tpu_custom_call.1} parent=47 // pred_check_branch
          %495 = sbr.rel (%p493) target = $region52
        $region51: #{tpu_custom_call.1} parent=47 // pred_region
          %s496 = sand.u32 %s135, 1
          %s497 = scalar_lea.sflag [#allocation4], %s496
          %s498 = sand.u32 %s135, 1
          %s499 = smul.addr %s498, 32
          %s500 = scalar_lea.vmem [#allocation5], %s499
          %501 = dma.done %s497, 512
        $region52: #{tpu_custom_call.1} parent=47 // pred_fallthru
          _
      $region48: #{tpu_custom_call.1} parent=5 // pred_fallthru
        _
    $region6: #{tpu_custom_call.1} parent=1 // loop_footer
      %s20 = sadd.s32 1, %s16
    $region7: #{tpu_custom_call.1} parent=1 // loop_footer_branch
      %15 = sbr.rel target = $region3
    $region8: #{tpu_custom_call.1} parent=1 // loop_exit
      _
    %502 = vsyncpa [#allocation3], 1
    %s503 = scalar_lea.sflag [#allocation3], 1
    %504 = vsyncpa %s503, 1
    %505 = vsyncpa [#allocation4], 1
    %s506 = scalar_lea.sflag [#allocation4], 1
    %507 = vsyncpa %s506, 1

</llo_original>
